<compile_context>
chip_gen: v7x
topology: tpu7x:2x2x1
jax: 0.10.0
libtpu: 0.0.40
codegen_flags: <defaults>
</compile_context>

<pallas_src>
import functools

import jax
import jax.numpy as jnp
from jax.experimental import pallas as pl
from jax.experimental.pallas import tpu as pltpu


def _make_kernel(eps, T, matmul_dtype, approx_recip, fold_time):
    inv_T = 1.0 / float(T)
    inv_Tm1 = 1.0 / float(max(T - 1, 1))
    exact = jnp.dtype(matmul_dtype) == jnp.dtype(jnp.float32)

    def kernel(feat_ref, lin_ref, w_ref, b_ref, pred_ref, off_ref):
        x = feat_ref[...].astype(jnp.float32)                 # (bblk, T, Fin)

        # ---- CMVN over time: two-pass mean/var (no catastrophic cancellation)
        mean = jnp.sum(x, axis=1, keepdims=True) * jnp.float32(inv_T)
        xc = x - mean
        var = jnp.sum(xc * xc, axis=1, keepdims=True) * jnp.float32(inv_Tm1)
        denom = jnp.sqrt(var) + jnp.float32(eps)
        if approx_recip:
            inv = pl.reciprocal(denom, approx=True)           # EUP, frees VALU
        else:
            inv = 1.0 / denom                                 # exact path
        xn = xc * inv                                         # (bblk, T, Fin)

        bblk, tt, fin = xn.shape
        fout = w_ref.shape[1]
        dot_kwargs = dict(preferred_element_type=jnp.float32)
        if exact:
            dot_kwargs["precision"] = jax.lax.Precision.HIGHEST

        # ---- Linear layer on the MXU ----------------------------------------
        if fold_time:
            # Free relabel (T % 8 == 0): one big (bblk*T, Fin) @ (Fin, Fout).
            lhs = xn.reshape(bblk * tt, fin).astype(matmul_dtype)
            off = jnp.dot(lhs, w_ref[...], **dot_kwargs).reshape(bblk, tt, fout)
        else:
            off = jax.lax.dot_general(
                xn.astype(matmul_dtype), w_ref[...],
                (((2,), (0,)), ((), ())), **dot_kwargs)       # (bblk, T, Fout)

        off = off + b_ref[...]                                # (1, Fout) broadcast
        off = 0.5 * (jnp.tanh(0.5 * off) + 1.0)               # sigmoid via tanh (EUP)

        off_ref[...] = off.astype(off_ref.dtype)
        pred_ref[...] = (lin_ref[...].astype(jnp.float32) * off).astype(pred_ref.dtype)

    return kernel


def _divisors_desc(n):
    return [d for d in range(n, 0, -1) if n % d == 0]


@functools.partial(
    jax.jit,
    static_argnames=("eps", "matmul_dtype", "approx_recip", "offset_dtype"),
)
def linear_residual(
    features,
    linears,
    weight,
    bias,
    *,
    eps=1e-6,
    matmul_dtype=jnp.float32,
    approx_recip=False,
    offset_dtype=None,
):
    """features: (B, T, F_in); linears: (B, T, F_out);
    weight: (F_out, F_in) torch layout; bias: (F_out,)."""
    B, T, F_in = features.shape
    F_out, F_in_w = weight.shape
    assert F_in_w == F_in
    assert linears.shape == (B, T, F_out)
    assert T >= 2, "unbiased std (ddof=1) over the time axis requires T >= 2"

    pred_dtype = linears.dtype
    off_dtype = jnp.dtype(offset_dtype) if offset_dtype is not None else jnp.dtype(features.dtype)

    in_b = jnp.dtype(features.dtype).itemsize
    lin_b = jnp.dtype(linears.dtype).itemsize
    pred_b = jnp.dtype(pred_dtype).itemsize
    off_b = jnp.dtype(off_dtype).itemsize
    mat_b = jnp.dtype(matmul_dtype).itemsize

    # ---- generation-aware VMEM limit / tile budget ---------------------------
    try:
        phys_vmem = int(getattr(pltpu.get_tpu_info(), "vmem_capacity_bytes",
                                128 * 1024 * 1024))
    except Exception:
        phys_vmem = 128 * 1024 * 1024
    if phys_vmem <= 72 * 1024 * 1024:        # v7x-class: 64 MiB / TC, 2 TCs
        vmem_limit = 48 * 1024 * 1024
        target_cores = 2                     # keep >= 2 grid steps for megacore
    else:                                    # v5e / v6e: 128 MiB, 1 TC
        vmem_limit = 100 * 1024 * 1024
        target_cores = 1
    budget = int(vmem_limit * 0.75)          # headroom for compiler scratch

    # ---- optional Fout tiling: only when the full weight block would hog VMEM
    fout_blk = F_out
    if F_in * F_out * mat_b > budget // 4 and F_out % 256 == 0:
        fout_blk = 256
        while (F_out % (fout_blk * 2) == 0
               and F_in * (fout_blk * 2) * mat_b <= budget // 4):
            fout_blk *= 2
    # TODO(synk): very large weights with F_out not a multiple of 256 still use
    # a single replicated weight block (no K/N split without padding).
    nj = F_out // fout_blk
    weight_buffers = 1 if (nj == 1 and hasattr(pl, "Buffered")) else 2

    # ---- batch tile: largest divisor of B fitting the corrected VMEM model ---
    def vmem_est(bblk):
        feat_blk = bblk * T * F_in * in_b
        lin_blk = bblk * T * fout_blk * lin_b
        pred_blk = bblk * T * fout_blk * pred_b
        off_blk = bblk * T * fout_blk * off_b
        io = 2 * (feat_blk + lin_blk + pred_blk + off_blk)        # double buffers
        w = weight_buffers * (F_in * fout_blk * mat_b + fout_blk * 4)
        interm = (3 * bblk * T * F_in * 4                         # x, xc, xn (f32)
                  + bblk * T * F_in * mat_b                       # matmul lhs copy
                  + 2 * bblk * T * fout_blk * 4)                  # f32 'off' temps
        return io + w + interm

    cap = max(1, B // target_cores) if B >= target_cores else B
    bblk = 1
    for d in _divisors_desc(B):
        if d <= cap and vmem_est(d) <= budget:
            bblk = d
            break
    nb = B // bblk                           # exact: no batch padding, no crop

    # ---- operand prep: only the tiny weight/bias are touched -----------------
    w_t = weight.T.astype(matmul_dtype)                  # (F_in, F_out)
    b2 = bias.reshape(1, F_out).astype(jnp.float32)      # (1, F_out)

    fold_time = (T % 8 == 0)   # (bblk,T,Fin)->(bblk*T,Fin) is a free relabel
    kernel = _make_kernel(eps, T, matmul_dtype, approx_recip, fold_time)

    # Invariant weight/bias: single buffer when they never change block index.
    inv_kwargs = dict(pipeline_mode=pl.Buffered(1)) if weight_buffers == 1 else {}

    in_specs = [
        pl.BlockSpec((bblk, T, F_in), lambda i, j: (i, 0, 0)),     # features
        pl.BlockSpec((bblk, T, fout_blk), lambda i, j: (i, 0, j)), # linears
        pl.BlockSpec((F_in, fout_blk), lambda i, j: (0, j), **inv_kwargs),  # weight
        pl.BlockSpec((1, fout_blk), lambda i, j: (0, j), **inv_kwargs),     # bias
    ]
    out_specs = [
        pl.BlockSpec((bblk, T, fout_blk), lambda i, j: (i, 0, j)),  # predicted
        pl.BlockSpec((bblk, T, fout_blk), lambda i, j: (i, 0, j)),  # offset
    ]

    cost = pl.CostEstimate(
        flops=2 * B * T * F_in * F_out,
        transcendentals=B * T * F_out,
        bytes_accessed=(B * T * F_in * in_b + B * T * F_out * lin_b
                        + F_in * F_out * mat_b + F_out * 4
                        + B * T * F_out * (pred_b + off_b)),
    )

    predicted, offset = pl.pallas_call(
        kernel,
        out_shape=(
            jax.ShapeDtypeStruct((B, T, F_out), pred_dtype),
            jax.ShapeDtypeStruct((B, T, F_out), off_dtype),
        ),
        grid_spec=pltpu.PrefetchScalarGridSpec(
            num_scalar_prefetch=0,
            grid=(nb, nj),
            in_specs=in_specs,
            out_specs=out_specs,
        ),
        compiler_params=pltpu.CompilerParams(
            dimension_semantics=("parallel", "parallel"),
            vmem_limit_bytes=vmem_limit,
        ),
        cost_estimate=cost,
    )(features, linears, w_t, b2)

    return predicted, {"offset": offset}


def _reference(features, linears, weight, bias, eps=1e-6):
    mean = jnp.mean(features, axis=1, keepdims=True)
    std = jnp.std(features, axis=1, keepdims=True, ddof=1)
    xn = (features - mean) / (std + eps)
    off = jax.nn.sigmoid(xn @ weight.T + bias)
    return linears * off, off


if __name__ == "__main__":
    # Small synthetic shapes: input_size = output_size = 32, batch=2, time=8.
    B, T, F = 2, 8, 32
    key = jax.random.PRNGKey(0)
    k1, k2, k3, k4 = jax.random.split(key, 4)

    features = jax.random.normal(k1, (B, T, F), dtype=jnp.float32)
    linears = jax.random.normal(k2, (B, T, F), dtype=jnp.float32)
    weight = jax.random.normal(k3, (F, F), dtype=jnp.float32) * 0.1
    bias = jax.random.normal(k4, (F,), dtype=jnp.float32) * 0.1

    ref_pred, ref_off = _reference(features, linears, weight, bias, eps=1e-6)

    # Default path: f32 MXU (HIGHEST precision), exact reciprocal, f32 outputs.
    predicted, extras = linear_residual(features, linears, weight, bias, eps=1e-6)
    predicted = jax.block_until_ready(predicted)
    offset = jax.block_until_ready(extras["offset"])
    assert jnp.allclose(predicted, ref_pred, atol=1e-5, rtol=1e-5)
    assert jnp.allclose(offset, ref_off, atol=1e-5, rtol=1e-5)

    # Fast path: bf16 MXU operands + EUP approx reciprocal + bf16 offset stream.
    pred_fast, extras_fast = linear_residual(
        features, linears, weight, bias, eps=1e-6,
        matmul_dtype=jnp.bfloat16, approx_recip=True, offset_dtype=jnp.bfloat16,
    )
    pred_fast = jax.block_until_ready(pred_fast)
    off_fast = jax.block_until_ready(extras_fast["offset"]).astype(jnp.float32)
    assert jnp.allclose(pred_fast, ref_pred, atol=3e-2, rtol=3e-2)
    assert jnp.allclose(off_fast, ref_off, atol=3e-2, rtol=3e-2)

    print("KERNEL_OK")
</pallas_src>

<mosaic_0001>
module attributes {stable_mosaic.version = 11 : i64} {
  func.func @kernel(%arg0: i32, %arg1: i32, %arg2: memref<2x8x32xf32, #tpu.memory_space<vmem>>, %arg3: memref<2x8x32xf32, #tpu.memory_space<vmem>>, %arg4: memref<32x32xf32, #tpu.memory_space<vmem>>, %arg5: memref<1x32xf32, #tpu.memory_space<vmem>>, %arg6: memref<2x8x32xf32, #tpu.memory_space<vmem>>, %arg7: memref<2x8x32xf32, #tpu.memory_space<vmem>>) attributes {dimension_semantics = [#tpu.dimension_semantics<parallel>, #tpu.dimension_semantics<parallel>], iteration_bounds = array<i64: 1, 1>, scalar_prefetch = 0 : i64, scratch_operands = 0 : i64, tpu.core_type = #tpu.core_type<tc>, window_params = [{transform_indices = @transform_0, window_bounds = array<i64: 2, 8, 32>}, {transform_indices = @transform_1, window_bounds = array<i64: 2, 8, 32>}, {pipeline_mode = #tpu.pipeline_mode<synchronous>, transform_indices = @transform_2, window_bounds = array<i64: 32, 32>}, {pipeline_mode = #tpu.pipeline_mode<synchronous>, transform_indices = @transform_3, window_bounds = array<i64: 1, 32>}, {transform_indices = @transform_4, window_bounds = array<i64: 2, 8, 32>}, {transform_indices = @transform_5, window_bounds = array<i64: 2, 8, 32>}]} {
    %c0 = arith.constant 0 : index
    %c0_0 = arith.constant 0 : index
    %c0_1 = arith.constant 0 : index
    %0 = vector.load %arg2[%c0, %c0_0, %c0_1] : memref<2x8x32xf32, #tpu.memory_space<vmem>>, vector<2x8x32xf32>
    %cst = arith.constant dense<0.000000e+00> : vector<2x32xf32>
    %1 = vector.multi_reduction <add>, %0, %cst [1] : vector<2x8x32xf32> to vector<2x32xf32>
    %2 = vector.shape_cast %1 : vector<2x32xf32> to vector<2x1x32xf32>
    %cst_2 = arith.constant 1.250000e-01 : f32
    %3 = vector.broadcast %cst_2 : f32 to vector<2x1x32xf32>
    %4 = arith.mulf %2, %3 : vector<2x1x32xf32>
    %5 = vector.broadcast %4 : vector<2x1x32xf32> to vector<2x8x32xf32>
    %6 = arith.subf %0, %5 : vector<2x8x32xf32>
    %7 = arith.mulf %6, %6 : vector<2x8x32xf32>
    %cst_3 = arith.constant dense<0.000000e+00> : vector<2x32xf32>
    %8 = vector.multi_reduction <add>, %7, %cst_3 [1] : vector<2x8x32xf32> to vector<2x32xf32>
    %9 = vector.shape_cast %8 : vector<2x32xf32> to vector<2x1x32xf32>
    %cst_4 = arith.constant 0.142857149 : f32
    %10 = vector.broadcast %cst_4 : f32 to vector<2x1x32xf32>
    %11 = arith.mulf %9, %10 : vector<2x1x32xf32>
    %12 = math.sqrt %11 : vector<2x1x32xf32>
    %cst_5 = arith.constant 9.99999997E-7 : f32
    %13 = vector.broadcast %cst_5 : f32 to vector<2x1x32xf32>
    %14 = arith.addf %12, %13 : vector<2x1x32xf32>
    %cst_6 = arith.constant 1.000000e+00 : f32
    %15 = vector.broadcast %cst_6 : f32 to vector<2x1x32xf32>
    %16 = arith.divf %15, %14 : vector<2x1x32xf32>
    %17 = vector.broadcast %16 : vector<2x1x32xf32> to vector<2x8x32xf32>
    %18 = arith.mulf %6, %17 : vector<2x8x32xf32>
    %19 = vector.shape_cast %18 : vector<2x8x32xf32> to vector<16x32xf32>
    %c0_7 = arith.constant 0 : index
    %c0_8 = arith.constant 0 : index
    %20 = vector.load %arg4[%c0_7, %c0_8] : memref<32x32xf32, #tpu.memory_space<vmem>>, vector<32x32xf32>
    %cst_9 = arith.constant dense<0.000000e+00> : vector<16x32xf32>
    %21 = tpu.matmul %19, %20, %cst_9 {dimension_numbers = #tpu.dot_dimension_numbers<[1], [0], [0], [1], [0, 0, 1, 1], [], []>, precision = #tpu.contract_precision<fp32>} : vector<16x32xf32>, vector<32x32xf32>, vector<16x32xf32> -> vector<16x32xf32>
    %22 = vector.shape_cast %21 : vector<16x32xf32> to vector<2x8x32xf32>
    %c0_10 = arith.constant 0 : index
    %c0_11 = arith.constant 0 : index
    %23 = vector.load %arg5[%c0_10, %c0_11] : memref<1x32xf32, #tpu.memory_space<vmem>>, vector<1x32xf32>
    %24 = vector.shape_cast %23 : vector<1x32xf32> to vector<1x1x32xf32>
    %25 = vector.broadcast %24 : vector<1x1x32xf32> to vector<2x8x32xf32>
    %26 = arith.addf %22, %25 : vector<2x8x32xf32>
    %cst_12 = arith.constant 5.000000e-01 : f32
    %27 = vector.broadcast %cst_12 : f32 to vector<2x8x32xf32>
    %28 = arith.mulf %27, %26 : vector<2x8x32xf32>
    %29 = math.tanh %28 : vector<2x8x32xf32>
    %cst_13 = arith.constant 1.000000e+00 : f32
    %30 = vector.broadcast %cst_13 : f32 to vector<2x8x32xf32>
    %31 = arith.addf %29, %30 : vector<2x8x32xf32>
    %cst_14 = arith.constant 5.000000e-01 : f32
    %32 = vector.broadcast %cst_14 : f32 to vector<2x8x32xf32>
    %33 = arith.mulf %32, %31 : vector<2x8x32xf32>
    %c0_15 = arith.constant 0 : index
    %c0_16 = arith.constant 0 : index
    %c0_17 = arith.constant 0 : index
    %34 = vector.load %arg7[%c0_15, %c0_16, %c0_17] : memref<2x8x32xf32, #tpu.memory_space<vmem>>, vector<2x8x32xf32>
    tpu.vector_store %arg7[%c0_15, %c0_16, %c0_17], %33 {strides = array<i32>} : memref<2x8x32xf32, #tpu.memory_space<vmem>>, vector<2x8x32xf32>,
    %c0_18 = arith.constant 0 : index
    %c0_19 = arith.constant 0 : index
    %c0_20 = arith.constant 0 : index
    %35 = vector.load %arg3[%c0_18, %c0_19, %c0_20] : memref<2x8x32xf32, #tpu.memory_space<vmem>>, vector<2x8x32xf32>
    %36 = arith.mulf %35, %33 : vector<2x8x32xf32>
    %c0_21 = arith.constant 0 : index
    %c0_22 = arith.constant 0 : index
    %c0_23 = arith.constant 0 : index
    %37 = vector.load %arg6[%c0_21, %c0_22, %c0_23] : memref<2x8x32xf32, #tpu.memory_space<vmem>>, vector<2x8x32xf32>
    tpu.vector_store %arg6[%c0_21, %c0_22, %c0_23], %36 {strides = array<i32>} : memref<2x8x32xf32, #tpu.memory_space<vmem>>, vector<2x8x32xf32>,
    return
  }
  func.func @transform_0(%arg0: i32, %arg1: i32) -> (i32, i32, i32) {
    %c0_i32 = arith.constant 0 : i32
    %c0_i32_0 = arith.constant 0 : i32
    %c0_i32_1 = arith.constant 0 : i32
    return %arg0, %c0_i32, %c0_i32_0 : i32, i32, i32
  }
  func.func @transform_1(%arg0: i32, %arg1: i32) -> (i32, i32, i32) {
    %c0_i32 = arith.constant 0 : i32
    %c0_i32_0 = arith.constant 0 : i32
    return %arg0, %c0_i32, %arg1 : i32, i32, i32
  }
  func.func @transform_2(%arg0: i32, %arg1: i32) -> (i32, i32) {
    %c0_i32 = arith.constant 0 : i32
    %c0_i32_0 = arith.constant 0 : i32
    return %c0_i32, %arg1 : i32, i32
  }
  func.func @transform_3(%arg0: i32, %arg1: i32) -> (i32, i32) {
    %c0_i32 = arith.constant 0 : i32
    %c0_i32_0 = arith.constant 0 : i32
    return %c0_i32, %arg1 : i32, i32
  }
  func.func @transform_4(%arg0: i32, %arg1: i32) -> (i32, i32, i32) {
    %c0_i32 = arith.constant 0 : i32
    %c0_i32_0 = arith.constant 0 : i32
    return %arg0, %c0_i32, %arg1 : i32, i32, i32
  }
  func.func @transform_5(%arg0: i32, %arg1: i32) -> (i32, i32, i32) {
    %c0_i32 = arith.constant 0 : i32
    %c0_i32_0 = arith.constant 0 : i32
    return %arg0, %c0_i32, %arg1 : i32, i32, i32
  }
}

</mosaic_0001>

<llo_original>
// kernel: linear_residual.1
$region0: #{linear_residual.1}
  #allocation0 [shape = 'u32[]', space=smem, size = 0x4, offset = 0x4, fixed_abs, tag = 'smem constant byte address 0x4 - core index']
  #allocation1 [shape = 'u32[144,128]{1,0:T(1,128)}', space=vmem, size = 0x12000, scoped, tag = 'internal scratch']
  %s0 = inlined_call_operand.hbm [shape: f32[2,8,32], index: 0, kind: input, shape index: {}]
  %s1 = inlined_call_operand.hbm [shape: f32[2,8,32], index: 1, kind: input, shape index: {}]
  %s2 = inlined_call_operand.hbm [shape: f32[32,32], index: 2, kind: input, shape index: {}]
  %s3 = inlined_call_operand.hbm [shape: f32[1,32], index: 3, kind: input, shape index: {}]
  %s4 = inlined_call_operand.hbm [shape: f32[2,8,32], index: 4, kind: output, shape index: {0}]
  %s5 = inlined_call_operand.hbm [shape: f32[2,8,32], index: 5, kind: output, shape index: {1}]
  %6 = xla_tuple %s4, %s5
  %s7 = sld [smem:[#allocation0]]
  $region50: #{linear_residual.1} parent=0
    _
  %s9 = ssub.s32 1, %s7
  %s10 = scalar_select 0, %s9, %s7
  $region1: #{linear_residual.1} parent=0
    #allocation2 [shape = 'u8[8192]{0}', space=vmem, size = 0x2000, scoped, tag = 'input window, operand 0, single buffered']
    #allocation3 [shape = 's32[1]{0}', space=sflag, size = 0x4, scoped, tag = 'scoped memory for linear_residual.1']
    #allocation4 [shape = 's32[1]{0}', space=sflag, size = 0x4, scoped, tag = 'scoped memory for linear_residual.1']
    #allocation5 [shape = 'u8[8192]{0}', space=vmem, size = 0x2000, scoped, tag = 'input window, operand 1, single buffered']
    #allocation6 [shape = 's32[1]{0}', space=sflag, size = 0x4, scoped, tag = 'scoped memory for linear_residual.1']
    #allocation7 [shape = 'u8[16384]{0}', space=vmem, size = 0x4000, scoped, tag = 'input window, operand 2, single buffered']
    #allocation8 [shape = 'u8[512]{0}', space=vmem, size = 0x400, scoped, tag = 'input window, operand 3, single buffered']
    #allocation9 [shape = 's32[1]{0}', space=sflag, size = 0x4, scoped, tag = 'scoped memory for linear_residual.1']
    #allocation10 [shape = 'u8[8192]{0}', space=vmem, size = 0x2000, scoped, tag = 'output window, operand 0, single buffered']
    #allocation11 [shape = 'u8[8192]{0}', space=vmem, size = 0x2000, scoped, tag = 'output window, operand 1, single buffered']
    #allocation12 [shape = 's32[1]{0}', space=sflag, size = 0x4, scoped, tag = 'scoped memory for linear_residual.1']
    %11 = vsyncpa [#allocation3], 0
    %12 = vsyncpa [#allocation6], 0
    %13 = vsyncpa [#allocation9], 0
    %14 = vsyncpa [#allocation4], 0
    %15 = vsyncpa [#allocation12], 0
    // Predicated region
    $region2: #{linear_residual.1} parent=1 // pred_check
      _
    $region3: #{linear_residual.1} parent=1 // pred_check_branch
      %17 = sbr.rel (0) target = $region5
    $region4: #{linear_residual.1} parent=1 // pred_region
      %s19 = ssub.s32 256, 256
      %20 = vsyncadd [#allocation3], %s19
      %s21 = sshll.u32 [#allocation2], 4
      %s22 = int_to_ptr.vmem [resolvable:$true] %s21
      %27 = dma.hbm_to_vmem [thread:$0]  %s0, 256, %s22, [#allocation3], 128, 128, 8
    $region5: #{linear_residual.1} parent=1 // pred_fallthru
      _
    // Predicated region
    $region6: #{linear_residual.1} parent=1 // pred_check
      _
    $region7: #{linear_residual.1} parent=1 // pred_check_branch
      %29 = sbr.rel (0) target = $region9
    $region8: #{linear_residual.1} parent=1 // pred_region
      %s31 = ssub.s32 256, 256
      %32 = vsyncadd [#allocation6], %s31
      %s33 = sshll.u32 [#allocation5], 4
      %s34 = int_to_ptr.vmem [resolvable:$true] %s33
      %39 = dma.hbm_to_vmem [thread:$0]  %s1, 256, %s34, [#allocation6], 128, 128, 8
    $region9: #{linear_residual.1} parent=1 // pred_fallthru
      _
    // Predicated region
    $region10: #{linear_residual.1} parent=1 // pred_check
      _
    $region11: #{linear_residual.1} parent=1 // pred_check_branch
      %41 = sbr.rel (0) target = $region13
    $region12: #{linear_residual.1} parent=1 // pred_region
      %s43 = ssub.s32 512, 512
      %44 = vsyncadd [#allocation6], %s43
      %s45 = sshll.u32 [#allocation7], 4
      %s46 = int_to_ptr.vmem [resolvable:$true] %s45
      %51 = dma.hbm_to_vmem [thread:$0]  %s2, 512, %s46, [#allocation6], 128, 128, 8
    $region13: #{linear_residual.1} parent=1 // pred_fallthru
      _
    // Predicated region
    $region14: #{linear_residual.1} parent=1 // pred_check
      _
    $region15: #{linear_residual.1} parent=1 // pred_check_branch
      %53 = sbr.rel (0) target = $region17
    $region16: #{linear_residual.1} parent=1 // pred_region
      %s55 = ssub.s32 16, 16
      %56 = vsyncadd [#allocation9], %s55
      %s58 = sshll.u32 [#allocation8], 4
      %s59 = int_to_ptr.vmem [resolvable:$true] %s58
      %61 = dma.hbm_to_vmem [thread:$0]  %s3, 16, %s59, [#allocation9]
    $region17: #{linear_residual.1} parent=1 // pred_fallthru
      _
    // Predicated region
    $region18: #{linear_residual.1} parent=1 // pred_check
      _
    $region19: #{linear_residual.1} parent=1 // pred_check_branch
      %63 = sbr.rel (0) target = $region21
    $region20: #{linear_residual.1} parent=1 // pred_region
      %64 = dma.done [#allocation3], 256
    $region21: #{linear_residual.1} parent=1 // pred_fallthru
      _
    // Predicated region
    $region22: #{linear_residual.1} parent=1 // pred_check
      _
    $region23: #{linear_residual.1} parent=1 // pred_check_branch
      %66 = sbr.rel (0) target = $region25
    $region24: #{linear_residual.1} parent=1 // pred_region
      %67 = dma.done [#allocation6], 256
    $region25: #{linear_residual.1} parent=1 // pred_fallthru
      _
    // Predicated region
    $region26: #{linear_residual.1} parent=1 // pred_check
      _
    $region27: #{linear_residual.1} parent=1 // pred_check_branch
      %69 = sbr.rel (0) target = $region29
    $region28: #{linear_residual.1} parent=1 // pred_region
      %70 = dma.done [#allocation6], 512
    $region29: #{linear_residual.1} parent=1 // pred_fallthru
      _
    // Predicated region
    $region30: #{linear_residual.1} parent=1 // pred_check
      _
    $region31: #{linear_residual.1} parent=1 // pred_check_branch
      %72 = sbr.rel (0) target = $region33
    $region32: #{linear_residual.1} parent=1 // pred_region
      %73 = dma.done [#allocation9], 16
    $region33: #{linear_residual.1} parent=1 // pred_fallthru
      _
    %v74 = vld [vmem:[#allocation2] sm:$0xff]
    %v75 = vld [vmem:[#allocation2 + $0x8] sm:$0xff]
    %vm76 = vcmask 261120
    %v77 = vsel %vm76, %v74, 0.0
    %v78 = vrot.slane %v77, 4
    %v79 = vadd.f32 %v77, %v78
    %v80 = vrot.slane %v79, 2
    %v81 = vadd.f32 %v79, %v80
    %v82 = vrot.slane %v81, 1
    %v83 = vadd.f32 %v81, %v82
    %v84 = vsel %vm76, %v75, 0.0
    %v85 = vrot.slane %v84, 4
    %v86 = vadd.f32 %v84, %v85
    %v87 = vrot.slane %v86, 2
    %v88 = vadd.f32 %v86, %v87
    %v89 = vrot.slane %v88, 1
    %v90 = vadd.f32 %v88, %v89
    %v91 = vmul.f32 %v83, 0.125
    %v92 = vmul.f32 %v90, 0.125
    %v93 = vsub.f32 %v74, %v91
    %v94 = vsub.f32 %v75, %v92
    %v95 = vmul.f32 %v93, %v93
    %v96 = vmul.f32 %v94, %v94
    %v97 = vsel %vm76, %v95, 0.0
    %v98 = vrot.slane %v97, 4
    %v99 = vadd.f32 %v97, %v98
    %v100 = vrot.slane %v99, 2
    %v101 = vadd.f32 %v99, %v100
    %v102 = vrot.slane %v101, 1
    %v103 = vadd.f32 %v101, %v102
    %v104 = vsel %vm76, %v96, 0.0
    %v105 = vrot.slane %v104, 4
    %v106 = vadd.f32 %v104, %v105
    %v107 = vrot.slane %v106, 2
    %v108 = vadd.f32 %v106, %v107
    %v109 = vrot.slane %v108, 1
    %v110 = vadd.f32 %v108, %v109
    %v111 = vmul.f32 %v103, 0.14285715
    %v112 = vmul.f32 %v110, 0.14285715
    %v113 = vrsqrt.pop %v111
    %v114 = vmul.f32 %v111, %v113
    %vm115 = vcmp.eq.f32.partialorder %v111, inf
    %v116 = vsel %vm115, %v111, %v114
    %vm117 = vcmp.eq.f32.partialorder %v111, 0.0
    %v118 = vand.u32 %v111, 2147483648
    %v119 = vsel %vm117, %v118, %v116
    %v120 = vrsqrt.pop %v112
    %v121 = vmul.f32 %v112, %v120
    %vm122 = vcmp.eq.f32.partialorder %v112, inf
    %v123 = vsel %vm122, %v112, %v121
    %vm124 = vcmp.eq.f32.partialorder %v112, 0.0
    %v125 = vand.u32 %v112, 2147483648
    %v126 = vsel %vm124, %v125, %v123
    %v127 = vadd.f32 %v119, 1e-06
    %v128 = vadd.f32 %v126, 1e-06
    %v129 = vrcp.pop %v127
    %v130 = vmul.f32 1.0, %v129
    %v131 = vrcp.pop %v128
    %v132 = vmul.f32 1.0, %v131
    %v133 = vmul.f32 %v93, %v130
    %v134 = vmul.f32 %v94, %v132
    %v135 = vld [vmem:[#allocation7] sm:$0xff]
    %v136 = vld [vmem:[#allocation7 + $0x8] sm:$0xff]
    %v137 = vld [vmem:[#allocation7 + $0x10] sm:$0xff]
    %v138 = vld [vmem:[#allocation7 + $0x18] sm:$0xff]
    %v140 = vsel %vm76, %v133, 0
    %v143 = vsel %vm76, %v134, 0
    %145 = vmatprep.subr.mxu0 0.0
    %v146 = vand.u32 %v135, 4294901760
    %147 = vmatpush1.msra.mxu0 %v146
    %148 = vmatprep.subr.mxu0 0.0
    %v149 = vand.u32 %v136, 4294901760
    %150 = vmatpush1.msra.mxu0 %v149
    %151 = vmatprep.subr.mxu0 0.0
    %v152 = vand.u32 %v137, 4294901760
    %153 = vmatpush1.msra.mxu0 %v152
    %154 = vmatprep.subr.mxu0 0.0
    %v155 = vand.u32 %v138, 4294901760
    %156 = vmatpush1.msra.mxu0 %v155
    %157 = vmatprep.subr.mxu0 0.0
    %158 = vmatpush1.msra.mxu0 0.0
    %159 = vmatprep.subr.mxu0 0.0
    %160 = vmatpush1.msra.mxu0 0.0
    %161 = vmatprep.subr.mxu0 0.0
    %162 = vmatpush1.msra.mxu0 0.0
    %163 = vmatprep.subr.mxu0 0.0
    %164 = vmatpush1.msra.mxu0 0.0
    %165 = vmatprep.subr.mxu0 0.0
    %166 = vmatpush1.msra.mxu0 0.0
    %167 = vmatprep.subr.mxu0 0.0
    %168 = vmatpush1.msra.mxu0 0.0
    %169 = vmatprep.subr.mxu0 0.0
    %170 = vmatpush1.msra.mxu0 0.0
    %171 = vmatprep.subr.mxu0 0.0
    %172 = vmatpush1.msra.mxu0 0.0
    %173 = vmatprep.subr.mxu0 0.0
    %174 = vmatpush1.msra.mxu0 0.0
    %175 = vmatprep.subr.mxu0 0.0
    %176 = vmatpush1.msra.mxu0 0.0
    %177 = vmatprep.subr.mxu0 0.0
    %178 = vmatpush1.msra.mxu0 0.0
    %179 = vmatprep.subr.mxu0 0.0
    %180 = vmatpush1.msra.mxu0 0.0
    %181 = vmatprep.subr.mxu0 0.0
    %182 = vmatpush1.msra.mxu0 0.0
    %183 = vmatprep.subr.mxu0 0.0
    %184 = vmatpush1.msra.mxu0 0.0
    %185 = vmatprep.subr.mxu0 0.0
    %186 = vmatpush1.msra.mxu0 0.0
    %187 = vmatprep.subr.mxu0 0.0
    %188 = vmatpush1.msra.mxu0 0.0
    %189 = vmatprep.subr.mxu0 0.0
    %190 = vmatpush1.msra.mxu0 0.0
    %191 = vmatprep.subr.mxu0 0.0
    %192 = vmatpush1.msra.mxu0 0.0
    %193 = vmatprep.subr.mxu0 0.0
    %194 = vmatpush1.msra.mxu0 0.0
    %195 = vmatprep.subr.mxu0 0.0
    %196 = vmatpush1.msra.mxu0 0.0
    %197 = vmatprep.subr.mxu0 0.0
    %198 = vmatpush1.msra.mxu0 0.0
    %199 = vmatprep.subr.mxu0 0.0
    %200 = vmatpush1.msra.mxu0 0.0
    %201 = vmatprep.subr.mxu0 0.0
    %202 = vmatpush1.msra.mxu0 0.0
    %203 = vmatprep.subr.mxu0 0.0
    %204 = vmatpush1.msra.mxu0 0.0
    %205 = vmatprep.subr.mxu0 0.0
    %206 = vmatpush1.msra.mxu0 0.0
    %207 = vmatprep.subr.mxu0 0.0
    %208 = vmatpush1.msra.mxu0 0.0
    %209 = vmatprep.subr.mxu0 0.0
    %210 = vmatpush1.msra.mxu0 0.0
    %211 = vmatprep.subr.mxu0 0.0
    %212 = vmatpush1.msra.mxu0 0.0
    %213 = vmatprep.mubr.f32.mxu0 0.0
    %v214 = vand.u32 %v140, 4294901760
    %v215 = vsub.f32 %v140, %v214
    %v216 = vand.u32 %v215, 4294901760
    %v217 = vsub.f32 %v215, %v216
    %v218 = vand.u32 %v217, 4294901760
    %219 = vmatmul.mubr.f32.gmra.mrb[0].mxu0 %v218
    %v220 = vpop.f32.mrb[0].mxu0
    %v221 = vadd.f32 0.0, %v220
    %v222 = vpop.f32.mrb[0].mxu0
    %223 = vmatprep.mubr.f32.mxu0 0.0
    %v224 = vand.u32 %v143, 4294901760
    %v225 = vsub.f32 %v143, %v224
    %v226 = vand.u32 %v225, 4294901760
    %v227 = vsub.f32 %v225, %v226
    %v228 = vand.u32 %v227, 4294901760
    %229 = vmatmul.mubr.f32.gmra.mrb[0].mxu0 %v228
    %v230 = vpop.f32.mrb[0].mxu0
    %v231 = vadd.f32 0.0, %v230
    %v232 = vpop.f32.mrb[0].mxu0
    %233 = vdwg.mxu0
    %234 = vmatprep.subr.mxu0 0.0
    %v235 = vand.u32 %v135, 4294901760
    %v236 = vsub.f32 %v135, %v235
    %v237 = vand.u32 %v236, 4294901760
    %v238 = vsub.f32 %v236, %v237
    %v239 = vand.u32 %v238, 4294901760
    %240 = vmatpush1.msra.mxu0 %v239
    %241 = vmatprep.subr.mxu0 0.0
    %v242 = vand.u32 %v136, 4294901760
    %v243 = vsub.f32 %v136, %v242
    %v244 = vand.u32 %v243, 4294901760
    %v245 = vsub.f32 %v243, %v244
    %v246 = vand.u32 %v245, 4294901760
    %247 = vmatpush1.msra.mxu0 %v246
    %248 = vmatprep.subr.mxu0 0.0
    %v249 = vand.u32 %v137, 4294901760
    %v250 = vsub.f32 %v137, %v249
    %v251 = vand.u32 %v250, 4294901760
    %v252 = vsub.f32 %v250, %v251
    %v253 = vand.u32 %v252, 4294901760
    %254 = vmatpush1.msra.mxu0 %v253
    %255 = vmatprep.subr.mxu0 0.0
    %v256 = vand.u32 %v138, 4294901760
    %v257 = vsub.f32 %v138, %v256
    %v258 = vand.u32 %v257, 4294901760
    %v259 = vsub.f32 %v257, %v258
    %v260 = vand.u32 %v259, 4294901760
    %261 = vmatpush1.msra.mxu0 %v260
    %262 = vmatprep.subr.mxu0 0.0
    %263 = vmatpush1.msra.mxu0 0.0
    %264 = vmatprep.subr.mxu0 0.0
    %265 = vmatpush1.msra.mxu0 0.0
    %266 = vmatprep.subr.mxu0 0.0
    %267 = vmatpush1.msra.mxu0 0.0
    %268 = vmatprep.subr.mxu0 0.0
    %269 = vmatpush1.msra.mxu0 0.0
    %270 = vmatprep.subr.mxu0 0.0
    %271 = vmatpush1.msra.mxu0 0.0
    %272 = vmatprep.subr.mxu0 0.0
    %273 = vmatpush1.msra.mxu0 0.0
    %274 = vmatprep.subr.mxu0 0.0
    %275 = vmatpush1.msra.mxu0 0.0
    %276 = vmatprep.subr.mxu0 0.0
    %277 = vmatpush1.msra.mxu0 0.0
    %278 = vmatprep.subr.mxu0 0.0
    %279 = vmatpush1.msra.mxu0 0.0
    %280 = vmatprep.subr.mxu0 0.0
    %281 = vmatpush1.msra.mxu0 0.0
    %282 = vmatprep.subr.mxu0 0.0
    %283 = vmatpush1.msra.mxu0 0.0
    %284 = vmatprep.subr.mxu0 0.0
    %285 = vmatpush1.msra.mxu0 0.0
    %286 = vmatprep.subr.mxu0 0.0
    %287 = vmatpush1.msra.mxu0 0.0
    %288 = vmatprep.subr.mxu0 0.0
    %289 = vmatpush1.msra.mxu0 0.0
    %290 = vmatprep.subr.mxu0 0.0
    %291 = vmatpush1.msra.mxu0 0.0
    %292 = vmatprep.subr.mxu0 0.0
    %293 = vmatpush1.msra.mxu0 0.0
    %294 = vmatprep.subr.mxu0 0.0
    %295 = vmatpush1.msra.mxu0 0.0
    %296 = vmatprep.subr.mxu0 0.0
    %297 = vmatpush1.msra.mxu0 0.0
    %298 = vmatprep.subr.mxu0 0.0
    %299 = vmatpush1.msra.mxu0 0.0
    %300 = vmatprep.subr.mxu0 0.0
    %301 = vmatpush1.msra.mxu0 0.0
    %302 = vmatprep.subr.mxu0 0.0
    %303 = vmatpush1.msra.mxu0 0.0
    %304 = vmatprep.subr.mxu0 0.0
    %305 = vmatpush1.msra.mxu0 0.0
    %306 = vmatprep.subr.mxu0 0.0
    %307 = vmatpush1.msra.mxu0 0.0
    %308 = vmatprep.subr.mxu0 0.0
    %309 = vmatpush1.msra.mxu0 0.0
    %310 = vmatprep.subr.mxu0 0.0
    %311 = vmatpush1.msra.mxu0 0.0
    %312 = vmatprep.subr.mxu0 0.0
    %313 = vmatpush1.msra.mxu0 0.0
    %314 = vmatprep.subr.mxu0 0.0
    %315 = vmatpush1.msra.mxu0 0.0
    %316 = vmatprep.subr.mxu0 0.0
    %317 = vmatpush1.msra.mxu0 0.0
    %318 = vmatprep.mubr.f32.mxu0 0.0
    %v319 = vand.u32 %v140, 4294901760
    %320 = vmatmul.mubr.f32.gmra.mrb[0].mxu0 %v319
    %v321 = vpop.f32.mrb[0].mxu0
    %v322 = vadd.f32 %v221, %v321
    %v323 = vpop.f32.mrb[0].mxu0
    %324 = vmatprep.mubr.f32.mxu0 0.0
    %v325 = vand.u32 %v143, 4294901760
    %326 = vmatmul.mubr.f32.gmra.mrb[0].mxu0 %v325
    %v327 = vpop.f32.mrb[0].mxu0
    %v328 = vadd.f32 %v231, %v327
    %v329 = vpop.f32.mrb[0].mxu0
    %330 = vdwg.mxu0
    %331 = vmatprep.subr.mxu0 0.0
    %v332 = vand.u32 %v135, 4294901760
    %v333 = vsub.f32 %v135, %v332
    %334 = vmatpush1.msra.mxu0 %v333
    %335 = vmatprep.subr.mxu0 0.0
    %v336 = vand.u32 %v136, 4294901760
    %v337 = vsub.f32 %v136, %v336
    %338 = vmatpush1.msra.mxu0 %v337
    %339 = vmatprep.subr.mxu0 0.0
    %v340 = vand.u32 %v137, 4294901760
    %v341 = vsub.f32 %v137, %v340
    %342 = vmatpush1.msra.mxu0 %v341
    %343 = vmatprep.subr.mxu0 0.0
    %v344 = vand.u32 %v138, 4294901760
    %v345 = vsub.f32 %v138, %v344
    %346 = vmatpush1.msra.mxu0 %v345
    %347 = vmatprep.subr.mxu0 0.0
    %348 = vmatpush1.msra.mxu0 0.0
    %349 = vmatprep.subr.mxu0 0.0
    %350 = vmatpush1.msra.mxu0 0.0
    %351 = vmatprep.subr.mxu0 0.0
    %352 = vmatpush1.msra.mxu0 0.0
    %353 = vmatprep.subr.mxu0 0.0
    %354 = vmatpush1.msra.mxu0 0.0
    %355 = vmatprep.subr.mxu0 0.0
    %356 = vmatpush1.msra.mxu0 0.0
    %357 = vmatprep.subr.mxu0 0.0
    %358 = vmatpush1.msra.mxu0 0.0
    %359 = vmatprep.subr.mxu0 0.0
    %360 = vmatpush1.msra.mxu0 0.0
    %361 = vmatprep.subr.mxu0 0.0
    %362 = vmatpush1.msra.mxu0 0.0
    %363 = vmatprep.subr.mxu0 0.0
    %364 = vmatpush1.msra.mxu0 0.0
    %365 = vmatprep.subr.mxu0 0.0
    %366 = vmatpush1.msra.mxu0 0.0
    %367 = vmatprep.subr.mxu0 0.0
    %368 = vmatpush1.msra.mxu0 0.0
    %369 = vmatprep.subr.mxu0 0.0
    %370 = vmatpush1.msra.mxu0 0.0
    %371 = vmatprep.subr.mxu0 0.0
    %372 = vmatpush1.msra.mxu0 0.0
    %373 = vmatprep.subr.mxu0 0.0
    %374 = vmatpush1.msra.mxu0 0.0
    %375 = vmatprep.subr.mxu0 0.0
    %376 = vmatpush1.msra.mxu0 0.0
    %377 = vmatprep.subr.mxu0 0.0
    %378 = vmatpush1.msra.mxu0 0.0
    %379 = vmatprep.subr.mxu0 0.0
    %380 = vmatpush1.msra.mxu0 0.0
    %381 = vmatprep.subr.mxu0 0.0
    %382 = vmatpush1.msra.mxu0 0.0
    %383 = vmatprep.subr.mxu0 0.0
    %384 = vmatpush1.msra.mxu0 0.0
    %385 = vmatprep.subr.mxu0 0.0
    %386 = vmatpush1.msra.mxu0 0.0
    %387 = vmatprep.subr.mxu0 0.0
    %388 = vmatpush1.msra.mxu0 0.0
    %389 = vmatprep.subr.mxu0 0.0
    %390 = vmatpush1.msra.mxu0 0.0
    %391 = vmatprep.subr.mxu0 0.0
    %392 = vmatpush1.msra.mxu0 0.0
    %393 = vmatprep.subr.mxu0 0.0
    %394 = vmatpush1.msra.mxu0 0.0
    %395 = vmatprep.subr.mxu0 0.0
    %396 = vmatpush1.msra.mxu0 0.0
    %397 = vmatprep.subr.mxu0 0.0
    %398 = vmatpush1.msra.mxu0 0.0
    %399 = vmatprep.subr.mxu0 0.0
    %400 = vmatpush1.msra.mxu0 0.0
    %401 = vmatprep.subr.mxu0 0.0
    %402 = vmatpush1.msra.mxu0 0.0
    %403 = vmatprep.mubr.f32.mxu0 0.0
    %v404 = vand.u32 %v140, 4294901760
    %v405 = vsub.f32 %v140, %v404
    %406 = vmatmul.mubr.f32.gmra.mrb[0].mxu0 %v405
    %v407 = vpop.f32.mrb[0].mxu0
    %v408 = vadd.f32 %v322, %v407
    %v409 = vpop.f32.mrb[0].mxu0
    %410 = vmatprep.mubr.f32.mxu0 0.0
    %v411 = vand.u32 %v143, 4294901760
    %v412 = vsub.f32 %v143, %v411
    %413 = vmatmul.mubr.f32.gmra.mrb[0].mxu0 %v412
    %v414 = vpop.f32.mrb[0].mxu0
    %v415 = vadd.f32 %v328, %v414
    %v416 = vpop.f32.mrb[0].mxu0
    %417 = vdwg.mxu0
    %418 = vmatprep.subr.mxu0 0.0
    %v419 = vand.u32 %v135, 4294901760
    %420 = vmatpush1.msra.mxu0 %v419
    %421 = vmatprep.subr.mxu0 0.0
    %v422 = vand.u32 %v136, 4294901760
    %423 = vmatpush1.msra.mxu0 %v422
    %424 = vmatprep.subr.mxu0 0.0
    %v425 = vand.u32 %v137, 4294901760
    %426 = vmatpush1.msra.mxu0 %v425
    %427 = vmatprep.subr.mxu0 0.0
    %v428 = vand.u32 %v138, 4294901760
    %429 = vmatpush1.msra.mxu0 %v428
    %430 = vmatprep.subr.mxu0 0.0
    %431 = vmatpush1.msra.mxu0 0.0
    %432 = vmatprep.subr.mxu0 0.0
    %433 = vmatpush1.msra.mxu0 0.0
    %434 = vmatprep.subr.mxu0 0.0
    %435 = vmatpush1.msra.mxu0 0.0
    %436 = vmatprep.subr.mxu0 0.0
    %437 = vmatpush1.msra.mxu0 0.0
    %438 = vmatprep.subr.mxu0 0.0
    %439 = vmatpush1.msra.mxu0 0.0
    %440 = vmatprep.subr.mxu0 0.0
    %441 = vmatpush1.msra.mxu0 0.0
    %442 = vmatprep.subr.mxu0 0.0
    %443 = vmatpush1.msra.mxu0 0.0
    %444 = vmatprep.subr.mxu0 0.0
    %445 = vmatpush1.msra.mxu0 0.0
    %446 = vmatprep.subr.mxu0 0.0
    %447 = vmatpush1.msra.mxu0 0.0
    %448 = vmatprep.subr.mxu0 0.0
    %449 = vmatpush1.msra.mxu0 0.0
    %450 = vmatprep.subr.mxu0 0.0
    %451 = vmatpush1.msra.mxu0 0.0
    %452 = vmatprep.subr.mxu0 0.0
    %453 = vmatpush1.msra.mxu0 0.0
    %454 = vmatprep.subr.mxu0 0.0
    %455 = vmatpush1.msra.mxu0 0.0
    %456 = vmatprep.subr.mxu0 0.0
    %457 = vmatpush1.msra.mxu0 0.0
    %458 = vmatprep.subr.mxu0 0.0
    %459 = vmatpush1.msra.mxu0 0.0
    %460 = vmatprep.subr.mxu0 0.0
    %461 = vmatpush1.msra.mxu0 0.0
    %462 = vmatprep.subr.mxu0 0.0
    %463 = vmatpush1.msra.mxu0 0.0
    %464 = vmatprep.subr.mxu0 0.0
    %465 = vmatpush1.msra.mxu0 0.0
    %466 = vmatprep.subr.mxu0 0.0
    %467 = vmatpush1.msra.mxu0 0.0
    %468 = vmatprep.subr.mxu0 0.0
    %469 = vmatpush1.msra.mxu0 0.0
    %470 = vmatprep.subr.mxu0 0.0
    %471 = vmatpush1.msra.mxu0 0.0
    %472 = vmatprep.subr.mxu0 0.0
    %473 = vmatpush1.msra.mxu0 0.0
    %474 = vmatprep.subr.mxu0 0.0
    %475 = vmatpush1.msra.mxu0 0.0
    %476 = vmatprep.subr.mxu0 0.0
    %477 = vmatpush1.msra.mxu0 0.0
    %478 = vmatprep.subr.mxu0 0.0
    %479 = vmatpush1.msra.mxu0 0.0
    %480 = vmatprep.subr.mxu0 0.0
    %481 = vmatpush1.msra.mxu0 0.0
    %482 = vmatprep.subr.mxu0 0.0
    %483 = vmatpush1.msra.mxu0 0.0
    %484 = vmatprep.subr.mxu0 0.0
    %485 = vmatpush1.msra.mxu0 0.0
    %486 = vmatprep.mubr.f32.mxu0 0.0
    %v487 = vand.u32 %v140, 4294901760
    %v488 = vsub.f32 %v140, %v487
    %v489 = vand.u32 %v488, 4294901760
    %490 = vmatmul.mubr.f32.gmra.mrb[0].mxu0 %v489
    %v491 = vpop.f32.mrb[0].mxu0
    %v492 = vadd.f32 %v408, %v491
    %v493 = vpop.f32.mrb[0].mxu0
    %494 = vmatprep.mubr.f32.mxu0 0.0
    %v495 = vand.u32 %v143, 4294901760
    %v496 = vsub.f32 %v143, %v495
    %v497 = vand.u32 %v496, 4294901760
    %498 = vmatmul.mubr.f32.gmra.mrb[0].mxu0 %v497
    %v499 = vpop.f32.mrb[0].mxu0
    %v500 = vadd.f32 %v415, %v499
    %v501 = vpop.f32.mrb[0].mxu0
    %502 = vdwg.mxu0
    %503 = vmatprep.subr.mxu0 0.0
    %v504 = vand.u32 %v135, 4294901760
    %v505 = vsub.f32 %v135, %v504
    %v506 = vand.u32 %v505, 4294901760
    %507 = vmatpush1.msra.mxu0 %v506
    %508 = vmatprep.subr.mxu0 0.0
    %v509 = vand.u32 %v136, 4294901760
    %v510 = vsub.f32 %v136, %v509
    %v511 = vand.u32 %v510, 4294901760
    %512 = vmatpush1.msra.mxu0 %v511
    %513 = vmatprep.subr.mxu0 0.0
    %v514 = vand.u32 %v137, 4294901760
    %v515 = vsub.f32 %v137, %v514
    %v516 = vand.u32 %v515, 4294901760
    %517 = vmatpush1.msra.mxu0 %v516
    %518 = vmatprep.subr.mxu0 0.0
    %v519 = vand.u32 %v138, 4294901760
    %v520 = vsub.f32 %v138, %v519
    %v521 = vand.u32 %v520, 4294901760
    %522 = vmatpush1.msra.mxu0 %v521
    %523 = vmatprep.subr.mxu0 0.0
    %524 = vmatpush1.msra.mxu0 0.0
    %525 = vmatprep.subr.mxu0 0.0
    %526 = vmatpush1.msra.mxu0 0.0
    %527 = vmatprep.subr.mxu0 0.0
    %528 = vmatpush1.msra.mxu0 0.0
    %529 = vmatprep.subr.mxu0 0.0
    %530 = vmatpush1.msra.mxu0 0.0
    %531 = vmatprep.subr.mxu0 0.0
    %532 = vmatpush1.msra.mxu0 0.0
    %533 = vmatprep.subr.mxu0 0.0
    %534 = vmatpush1.msra.mxu0 0.0
    %535 = vmatprep.subr.mxu0 0.0
    %536 = vmatpush1.msra.mxu0 0.0
    %537 = vmatprep.subr.mxu0 0.0
    %538 = vmatpush1.msra.mxu0 0.0
    %539 = vmatprep.subr.mxu0 0.0
    %540 = vmatpush1.msra.mxu0 0.0
    %541 = vmatprep.subr.mxu0 0.0
    %542 = vmatpush1.msra.mxu0 0.0
    %543 = vmatprep.subr.mxu0 0.0
    %544 = vmatpush1.msra.mxu0 0.0
    %545 = vmatprep.subr.mxu0 0.0
    %546 = vmatpush1.msra.mxu0 0.0
    %547 = vmatprep.subr.mxu0 0.0
    %548 = vmatpush1.msra.mxu0 0.0
    %549 = vmatprep.subr.mxu0 0.0
    %550 = vmatpush1.msra.mxu0 0.0
    %551 = vmatprep.subr.mxu0 0.0
    %552 = vmatpush1.msra.mxu0 0.0
    %553 = vmatprep.subr.mxu0 0.0
    %554 = vmatpush1.msra.mxu0 0.0
    %555 = vmatprep.subr.mxu0 0.0
    %556 = vmatpush1.msra.mxu0 0.0
    %557 = vmatprep.subr.mxu0 0.0
    %558 = vmatpush1.msra.mxu0 0.0
    %559 = vmatprep.subr.mxu0 0.0
    %560 = vmatpush1.msra.mxu0 0.0
    %561 = vmatprep.subr.mxu0 0.0
    %562 = vmatpush1.msra.mxu0 0.0
    %563 = vmatprep.subr.mxu0 0.0
    %564 = vmatpush1.msra.mxu0 0.0
    %565 = vmatprep.subr.mxu0 0.0
    %566 = vmatpush1.msra.mxu0 0.0
    %567 = vmatprep.subr.mxu0 0.0
    %568 = vmatpush1.msra.mxu0 0.0
    %569 = vmatprep.subr.mxu0 0.0
    %570 = vmatpush1.msra.mxu0 0.0
    %571 = vmatprep.subr.mxu0 0.0
    %572 = vmatpush1.msra.mxu0 0.0
    %573 = vmatprep.subr.mxu0 0.0
    %574 = vmatpush1.msra.mxu0 0.0
    %575 = vmatprep.subr.mxu0 0.0
    %576 = vmatpush1.msra.mxu0 0.0
    %577 = vmatprep.subr.mxu0 0.0
    %578 = vmatpush1.msra.mxu0 0.0
    %579 = vmatprep.mubr.f32.mxu0 0.0
    %v580 = vand.u32 %v140, 4294901760
    %581 = vmatmul.mubr.f32.gmra.mrb[0].mxu0 %v580
    %v582 = vpop.f32.mrb[0].mxu0
    %v583 = vadd.f32 %v492, %v582
    %v584 = vpop.f32.mrb[0].mxu0
    %585 = vmatprep.mubr.f32.mxu0 0.0
    %v586 = vand.u32 %v143, 4294901760
    %587 = vmatmul.mubr.f32.gmra.mrb[0].mxu0 %v586
    %v588 = vpop.f32.mrb[0].mxu0
    %v589 = vadd.f32 %v500, %v588
    %v590 = vpop.f32.mrb[0].mxu0
    %591 = vdwg.mxu0
    %592 = vmatprep.subr.mxu0 0.0
    %v593 = vand.u32 %v135, 4294901760
    %594 = vmatpush1.msra.mxu0 %v593
    %595 = vmatprep.subr.mxu0 0.0
    %v596 = vand.u32 %v136, 4294901760
    %597 = vmatpush1.msra.mxu0 %v596
    %598 = vmatprep.subr.mxu0 0.0
    %v599 = vand.u32 %v137, 4294901760
    %600 = vmatpush1.msra.mxu0 %v599
    %601 = vmatprep.subr.mxu0 0.0
    %v602 = vand.u32 %v138, 4294901760
    %603 = vmatpush1.msra.mxu0 %v602
    %604 = vmatprep.subr.mxu0 0.0
    %605 = vmatpush1.msra.mxu0 0.0
    %606 = vmatprep.subr.mxu0 0.0
    %607 = vmatpush1.msra.mxu0 0.0
    %608 = vmatprep.subr.mxu0 0.0
    %609 = vmatpush1.msra.mxu0 0.0
    %610 = vmatprep.subr.mxu0 0.0
    %611 = vmatpush1.msra.mxu0 0.0
    %612 = vmatprep.subr.mxu0 0.0
    %613 = vmatpush1.msra.mxu0 0.0
    %614 = vmatprep.subr.mxu0 0.0
    %615 = vmatpush1.msra.mxu0 0.0
    %616 = vmatprep.subr.mxu0 0.0
    %617 = vmatpush1.msra.mxu0 0.0
    %618 = vmatprep.subr.mxu0 0.0
    %619 = vmatpush1.msra.mxu0 0.0
    %620 = vmatprep.subr.mxu0 0.0
    %621 = vmatpush1.msra.mxu0 0.0
    %622 = vmatprep.subr.mxu0 0.0
    %623 = vmatpush1.msra.mxu0 0.0
    %624 = vmatprep.subr.mxu0 0.0
    %625 = vmatpush1.msra.mxu0 0.0
    %626 = vmatprep.subr.mxu0 0.0
    %627 = vmatpush1.msra.mxu0 0.0
    %628 = vmatprep.subr.mxu0 0.0
    %629 = vmatpush1.msra.mxu0 0.0
    %630 = vmatprep.subr.mxu0 0.0
    %631 = vmatpush1.msra.mxu0 0.0
    %632 = vmatprep.subr.mxu0 0.0
    %633 = vmatpush1.msra.mxu0 0.0
    %634 = vmatprep.subr.mxu0 0.0
    %635 = vmatpush1.msra.mxu0 0.0
    %636 = vmatprep.subr.mxu0 0.0
    %637 = vmatpush1.msra.mxu0 0.0
    %638 = vmatprep.subr.mxu0 0.0
    %639 = vmatpush1.msra.mxu0 0.0
    %640 = vmatprep.subr.mxu0 0.0
    %641 = vmatpush1.msra.mxu0 0.0
    %642 = vmatprep.subr.mxu0 0.0
    %643 = vmatpush1.msra.mxu0 0.0
    %644 = vmatprep.subr.mxu0 0.0
    %645 = vmatpush1.msra.mxu0 0.0
    %646 = vmatprep.subr.mxu0 0.0
    %647 = vmatpush1.msra.mxu0 0.0
    %648 = vmatprep.subr.mxu0 0.0
    %649 = vmatpush1.msra.mxu0 0.0
    %650 = vmatprep.subr.mxu0 0.0
    %651 = vmatpush1.msra.mxu0 0.0
    %652 = vmatprep.subr.mxu0 0.0
    %653 = vmatpush1.msra.mxu0 0.0
    %654 = vmatprep.subr.mxu0 0.0
    %655 = vmatpush1.msra.mxu0 0.0
    %656 = vmatprep.subr.mxu0 0.0
    %657 = vmatpush1.msra.mxu0 0.0
    %658 = vmatprep.subr.mxu0 0.0
    %659 = vmatpush1.msra.mxu0 0.0
    %660 = vmatprep.mubr.f32.mxu0 0.0
    %v661 = vand.u32 %v140, 4294901760
    %662 = vmatmul.mubr.f32.gmra.mrb[0].mxu0 %v661
    %v663 = vpop.f32.mrb[0].mxu0
    %v664 = vadd.f32 %v583, %v663
    %v665 = vpop.f32.mrb[0].mxu0
    %666 = vmatprep.mubr.f32.mxu0 0.0
    %v667 = vand.u32 %v143, 4294901760
    %668 = vmatmul.mubr.f32.gmra.mrb[0].mxu0 %v667
    %v669 = vpop.f32.mrb[0].mxu0
    %v670 = vadd.f32 %v589, %v669
    %v671 = vpop.f32.mrb[0].mxu0
    %672 = vdwg.mxu0
    %v673 = vld [vmem:[#allocation8] sm:$0x1]
    %v675 = vlaneseq
    %v676 = vshrl.u32 %v675, 7
    %v677 = vsub.s32 0, %v676
    %v678 = vrot.slane %v673, %v677
    %v680 = vadd.f32 %v664, %v678
    %v681 = vadd.f32 %v670, %v678
    %v682 = vmul.f32 %v680, 0.5
    %v683 = vmul.f32 %v681, 0.5
    %v684 = vtanh.pop %v682
    %v685 = vtanh.pop %v683
    %v686 = vadd.f32 %v684, 1.0
    %v687 = vadd.f32 %v685, 1.0
    %v688 = vmul.f32 %v686, 0.5
    %v689 = vmul.f32 %v687, 0.5
    %690 = vst.msk [vmem:[#allocation11] sm:$0xff] %vm76, %v688
    %691 = vst.msk [vmem:[#allocation11 + $0x8] sm:$0xff] %vm76, %v689
    %v692 = vld [vmem:[#allocation5] sm:$0xff]
    %v693 = vld [vmem:[#allocation5 + $0x8] sm:$0xff]
    %v694 = vmul.f32 %v692, %v688
    %v695 = vmul.f32 %v693, %v689
    %696 = vst.msk [vmem:[#allocation10] sm:$0xff] %vm76, %v694
    %697 = vst.msk [vmem:[#allocation10 + $0x8] sm:$0xff] %vm76, %v695
    // Predicated region
    $region34: #{linear_residual.1} parent=1 // pred_check
      _
    $region35: #{linear_residual.1} parent=1 // pred_check_branch
      %699 = sbr.rel (0) target = $region37
    $region36: #{linear_residual.1} parent=1 // pred_region
      %s701 = ssub.s32 256, 256
      %702 = vsyncadd [#allocation4], %s701
      %s703 = sshll.u32 [#allocation10], 4
      %s704 = int_to_ptr.vmem [resolvable:$true] %s703
      %709 = dma.vmem_to_hbm [thread:$0]  %s704, 256, %s4, [#allocation4], 128, 128, 8
    $region37: #{linear_residual.1} parent=1 // pred_fallthru
      _
    // Predicated region
    $region38: #{linear_residual.1} parent=1 // pred_check
      _
    $region39: #{linear_residual.1} parent=1 // pred_check_branch
      %711 = sbr.rel (0) target = $region41
    $region40: #{linear_residual.1} parent=1 // pred_region
      %s713 = ssub.s32 256, 256
      %714 = vsyncadd [#allocation12], %s713
      %s715 = sshll.u32 [#allocation11], 4
      %s716 = int_to_ptr.vmem [resolvable:$true] %s715
      %721 = dma.vmem_to_hbm [thread:$0]  %s716, 256, %s5, [#allocation12], 128, 128, 8
    $region41: #{linear_residual.1} parent=1 // pred_fallthru
      _
    // Predicated region
    $region42: #{linear_residual.1} parent=1 // pred_check
      _
    $region43: #{linear_residual.1} parent=1 // pred_check_branch
      %723 = sbr.rel (0) target = $region45
    $region44: #{linear_residual.1} parent=1 // pred_region
      %724 = dma.done [#allocation4], 256
    $region45: #{linear_residual.1} parent=1 // pred_fallthru
      _
    // Predicated region
    $region46: #{linear_residual.1} parent=1 // pred_check
      _
    $region47: #{linear_residual.1} parent=1 // pred_check_branch
      %726 = sbr.rel (0) target = $region49
    $region48: #{linear_residual.1} parent=1 // pred_region
      %727 = dma.done [#allocation12], 256
    $region49: #{linear_residual.1} parent=1 // pred_fallthru
      _
    %728 = vsyncpa [#allocation3], 1
    %729 = vsyncpa [#allocation6], 1
    %730 = vsyncpa [#allocation9], 1
    %731 = vsyncpa [#allocation4], 1
    %732 = vsyncpa [#allocation12], 1

</llo_original>
